<compile_context>
chip_gen: v5e
topology: v5e:2x2
jax: 0.10.0
libtpu: 0.0.40
codegen_flags: <defaults>
</compile_context>

<pallas_src>
import functools

import jax
import jax.numpy as jnp
from jax.experimental import pallas as pl
from jax.experimental.pallas import tpu as pltpu


def _round_up(v: int, m: int) -> int:
    return (v + m - 1) // m * m


# ----------------------------------------------------------------- kernels --

def _linear_kernel(x_ref, wt_ref, h_ref):
    """h = x_aug @ Wt_aug (bias folded in); bf16 inputs, f32 MXU accumulate."""
    h_ref[...] = jnp.dot(x_ref[...], wt_ref[...],
                         preferred_element_type=jnp.float32).astype(h_ref.dtype)


def _load_adj_bf16(adj_ref):
    adj = adj_ref[...]
    if adj.dtype != jnp.bfloat16:
        # int8/uint8 (or f32) HBM storage -> bf16 MXU input; cheap VPU filler.
        adj = adj.astype(jnp.float32).astype(jnp.bfloat16)
    return adj


def _agg_kernel(adj_ref, h_ref, o_ref, *, feat_resident: bool, tk: int):
    """out[i] += adj[i,k] @ h[k], accumulating directly into the f32 out tile."""
    k = pl.program_id(1)

    @pl.when(k == 0)
    def _init():
        o_ref[...] = jnp.zeros_like(o_ref)

    if feat_resident:
        h = h_ref[pl.ds(pl.multiple_of(k * tk, 128), tk), :]
    else:
        h = h_ref[...]
    o_ref[...] += jnp.dot(_load_adj_bf16(adj_ref), h,
                          preferred_element_type=jnp.float32)


def _agg_transform_kernel(adj_ref, x_ref, wt_ref, o_ref, acc_ref, *,
                          feat_resident: bool, tk: int):
    """acc[i] += adj[i,k] @ x_aug[k];  out[i] = acc[i] @ Wt_aug at last k."""
    k = pl.program_id(1)

    @pl.when(k == 0)
    def _init():
        acc_ref[...] = jnp.zeros_like(acc_ref)

    if feat_resident:
        x = x_ref[pl.ds(pl.multiple_of(k * tk, 128), tk), :]
    else:
        x = x_ref[...]
    acc_ref[...] += jnp.dot(_load_adj_bf16(adj_ref), x,
                            preferred_element_type=jnp.float32)

    @pl.when(k == pl.num_programs(1) - 1)
    def _finalize():
        o_ref[...] = jnp.dot(acc_ref[...].astype(jnp.bfloat16), wt_ref[...],
                             preferred_element_type=jnp.float32
                             ).astype(o_ref.dtype)


# ----------------------------------------------------------------- wrapper --

def graph_convolution_layer(x, adj, weight, bias=None, *,
                            tm=512, tk=1024,
                            adj_dtype=jnp.bfloat16,
                            feat_resident_bytes=8 * 1024 * 1024,
                            vmem_limit_bytes=32 * 1024 * 1024):
    """GCN layer forward: adj @ (x @ weight.T + bias).

    x: (N, F_in), adj: (N, N) dense, weight: (F_out, F_in), bias: (F_out,)|None.
    adj_dtype controls the HBM storage of the streamed adjacency (the dominant
    N^2 DMA stream): bf16 (default, exact for {0,1}), int8/uint8 (upcast
    in-kernel, exact for {0,1}, halves adj DMA bytes).  All matmuls run as
    bf16 MXU inputs with f32 accumulation.
    """
    n, f_in = x.shape
    f_out = weight.shape[0]
    out_dtype = x.dtype
    has_bias = bias is not None
    compute_dtype = jnp.bfloat16

    # Lane-dense / MXU-filling padding: feature dims -> multiples of 128.
    # An extra input column carries the bias ("ones trick").
    f_in_p = _round_up(f_in + (1 if has_bias else 0), 128)
    f_out_p = _round_up(f_out, 128)

    # Tile clamping for small graphs (keep (8,128)-legal blocks) + megacore
    # guard: keep >= 2 row tiles whenever possible so the "parallel" row axis
    # can shard across v7x's two TensorCores.
    n128 = _round_up(n, 128)
    tm = min(tm, n128)
    if n128 >= 256:
        tm = min(tm, max(128, (n128 // 2) // 128 * 128))
    tk = min(tk, n128)
    n_rows_p = _round_up(n, tm)
    n_cols_p = _round_up(n, tk)

    # Padded operands (zero padding leaves the matmul results unchanged).
    x_p = jnp.zeros((n_cols_p, f_in_p), dtype=compute_dtype)
    x_p = x_p.at[:n, :f_in].set(x.astype(compute_dtype))
    wt_p = jnp.zeros((f_in_p, f_out_p), dtype=compute_dtype)
    wt_p = wt_p.at[:f_in, :f_out].set(weight.T.astype(compute_dtype))
    if has_bias:
        x_p = x_p.at[:n, f_in].set(1.0)
        wt_p = wt_p.at[f_in, :f_out].set(bias.astype(compute_dtype))

    # TODO(synk): for multi-layer GCNs on a fixed graph, cache adj_p (pad+cast)
    # across layers/steps -- it is a full N^2 HBM pass by itself.
    adj_p = jnp.zeros((n_rows_p, n_cols_p), dtype=adj_dtype)
    adj_p = adj_p.at[:n, :n].set(adj.astype(adj_dtype))

    # Ordering: aggregate in the cheaper feature width.
    fuse_transform = f_in_p < f_out_p

    if fuse_transform:
        feat, feat_cols = x_p, f_in_p
    else:
        # Pre-transform ONCE (not once per row tile): h = x_aug @ Wt_aug.
        tr = min(512, tk)
        feat = pl.pallas_call(
            _linear_kernel,
            out_shape=jax.ShapeDtypeStruct((n_cols_p, f_out_p), compute_dtype),
            grid_spec=pltpu.PrefetchScalarGridSpec(
                num_scalar_prefetch=0,
                grid=(n_cols_p // tr,),
                in_specs=[pl.BlockSpec((tr, f_in_p), lambda i: (i, 0)),
                          pl.BlockSpec((f_in_p, f_out_p), lambda i: (0, 0))],
                out_specs=pl.BlockSpec((tr, f_out_p), lambda i: (i, 0)),
            ),
            compiler_params=pltpu.CompilerParams(
                dimension_semantics=("parallel",)),
        )(x_p, wt_p)
        feat_cols = f_out_p

    # x/h residency: fetch once if it fits the budget, else stream bf16 tiles.
    feat_resident = feat.size * feat.dtype.itemsize <= feat_resident_bytes
    if feat_resident:
        feat_spec = pl.BlockSpec((n_cols_p, feat_cols), lambda i, k: (0, 0))
    else:
        feat_spec = pl.BlockSpec((tk, feat_cols), lambda i, k: (k, 0))

    grid = (n_rows_p // tm, n_cols_p // tk)
    adj_spec = pl.BlockSpec((tm, tk), lambda i, k: (i, k))
    out_spec = pl.BlockSpec((tm, f_out_p), lambda i, k: (i, 0))
    cparams = pltpu.CompilerParams(
        dimension_semantics=("parallel", "arbitrary"),
        vmem_limit_bytes=vmem_limit_bytes)

    if fuse_transform:
        kernel = functools.partial(_agg_transform_kernel,
                                   feat_resident=feat_resident, tk=tk)
        out_p = pl.pallas_call(
            kernel,
            out_shape=jax.ShapeDtypeStruct((n_rows_p, f_out_p), jnp.float32),
            grid_spec=pltpu.PrefetchScalarGridSpec(
                num_scalar_prefetch=0,
                grid=grid,
                in_specs=[adj_spec, feat_spec,
                          pl.BlockSpec((f_in_p, f_out_p), lambda i, k: (0, 0))],
                out_specs=out_spec,
                scratch_shapes=[pltpu.VMEM((tm, f_in_p), jnp.float32)],
            ),
            compiler_params=cparams,
        )(adj_p, feat, wt_p)
    else:
        kernel = functools.partial(_agg_kernel,
                                   feat_resident=feat_resident, tk=tk)
        out_p = pl.pallas_call(
            kernel,
            out_shape=jax.ShapeDtypeStruct((n_rows_p, f_out_p), jnp.float32),
            grid_spec=pltpu.PrefetchScalarGridSpec(
                num_scalar_prefetch=0,
                grid=grid,
                in_specs=[adj_spec, feat_spec],
                out_specs=out_spec,
            ),
            compiler_params=cparams,
        )(adj_p, feat)

    return out_p[:n, :f_out].astype(out_dtype)


# TODO(synk): dropout / activation exist in __init__ but are never applied in
# forward(); the SparseTensor (torch.sparse.mm) adjacency path is not covered.


if __name__ == "__main__":
    def make_case(key, n, in_ch, out_ch):
        kx, ka, kw, kb = jax.random.split(key, 4)
        x = jax.random.normal(kx, (n, in_ch), dtype=jnp.float32)
        a = (jax.random.uniform(ka, (n, n)) < 0.1).astype(jnp.float32)
        adj = jnp.clip(a + a.T + jnp.eye(n, dtype=jnp.float32), 0.0, 1.0)
        bound = 1.0 / (in_ch ** 0.5)
        weight = jax.random.uniform(kw, (out_ch, in_ch), minval=-bound,
                                    maxval=bound, dtype=jnp.float32)
        bias = jax.random.uniform(kb, (out_ch,), minval=-bound, maxval=bound,
                                  dtype=jnp.float32)
        return x, adj, weight, bias

    def check(out, ref, tag):
        rel = float(jnp.max(jnp.abs(out - ref)) /
                    (jnp.max(jnp.abs(ref)) + 1e-6))
        assert out.shape == ref.shape, (tag, out.shape, ref.shape)
        # bf16 MXU inputs with f32 accumulation -> ~1e-2 relative tolerance.
        assert rel < 2e-2, (tag, rel)

    layer = jax.jit(graph_convolution_layer)
    layer_i8 = jax.jit(functools.partial(graph_convolution_layer,
                                         adj_dtype=jnp.int8))

    key = jax.random.PRNGKey(0)
    k1, k2 = jax.random.split(key)

    # Case 1: F_out == F_in -> precomputed-h + aggregate-only kernel.
    x, adj, weight, bias = make_case(k1, 64, 32, 32)
    ref = adj @ (x @ weight.T + bias)
    out = jax.block_until_ready(layer(x, adj, weight, bias))
    check(out, ref, "case1")

    # Case 2: F_out > F_in and N not a multiple of 128
    #         -> fused aggregate-then-transform kernel + row/col padding,
    #            2 row tiles (megacore-friendly).
    x2, adj2, weight2, bias2 = make_case(k2, 200, 32, 160)
    ref2 = adj2 @ (x2 @ weight2.T + bias2)
    out2 = jax.block_until_ready(layer(x2, adj2, weight2, bias2))
    check(out2, ref2, "case2")

    # Case 3: int8-stored adjacency (half the adj DMA bytes on v5e/v6e),
    #         upcast to bf16 inside the kernel.
    out3 = jax.block_until_ready(layer_i8(x, adj, weight, bias))
    check(out3, ref, "case3")

    print("KERNEL_OK")
</pallas_src>

<mosaic_0001>
module attributes {stable_mosaic.version = 11 : i64} {
  func.func @_linear_kernel(%arg0: i32, %arg1: memref<128x128xbf16, #tpu.memory_space<vmem>>, %arg2: memref<128x128xbf16, #tpu.memory_space<vmem>>, %arg3: memref<128x128xbf16, #tpu.memory_space<vmem>>) attributes {dimension_semantics = [#tpu.dimension_semantics<parallel>], iteration_bounds = array<i64: 1>, scalar_prefetch = 0 : i64, scratch_operands = 0 : i64, tpu.core_type = #tpu.core_type<tc>, window_params = [{transform_indices = @transform_0, window_bounds = array<i64: 128, 128>}, {pipeline_mode = #tpu.pipeline_mode<synchronous>, transform_indices = @transform_1, window_bounds = array<i64: 128, 128>}, {transform_indices = @transform_2, window_bounds = array<i64: 128, 128>}]} {
    %c0 = arith.constant 0 : index
    %c0_0 = arith.constant 0 : index
    %0 = vector.load %arg1[%c0, %c0_0] : memref<128x128xbf16, #tpu.memory_space<vmem>>, vector<128x128xbf16>
    %c0_1 = arith.constant 0 : index
    %c0_2 = arith.constant 0 : index
    %1 = vector.load %arg2[%c0_1, %c0_2] : memref<128x128xbf16, #tpu.memory_space<vmem>>, vector<128x128xbf16>
    %cst = arith.constant dense<0.000000e+00> : vector<128x128xf32>
    %2 = tpu.matmul %0, %1, %cst {dimension_numbers = #tpu.dot_dimension_numbers<[1], [0], [0], [1], [0, 0, 1, 1], [], []>} : vector<128x128xbf16>, vector<128x128xbf16>, vector<128x128xf32> -> vector<128x128xf32>
    %3 = arith.truncf %2 : vector<128x128xf32> to vector<128x128xbf16>
    %c0_3 = arith.constant 0 : index
    %c0_4 = arith.constant 0 : index
    %4 = vector.load %arg3[%c0_3, %c0_4] : memref<128x128xbf16, #tpu.memory_space<vmem>>, vector<128x128xbf16>
    tpu.vector_store %arg3[%c0_3, %c0_4], %3 {strides = array<i32>} : memref<128x128xbf16, #tpu.memory_space<vmem>>, vector<128x128xbf16>,
    return
  }
  func.func @transform_0(%arg0: i32) -> (i32, i32) {
    %c0_i32 = arith.constant 0 : i32
    %c0_i32_0 = arith.constant 0 : i32
    return %arg0, %c0_i32 : i32, i32
  }
  func.func @transform_1(%arg0: i32) -> (i32, i32) {
    %c0_i32 = arith.constant 0 : i32
    %c0_i32_0 = arith.constant 0 : i32
    %c0_i32_1 = arith.constant 0 : i32
    return %c0_i32, %c0_i32_0 : i32, i32
  }
  func.func @transform_2(%arg0: i32) -> (i32, i32) {
    %c0_i32 = arith.constant 0 : i32
    %c0_i32_0 = arith.constant 0 : i32
    return %arg0, %c0_i32 : i32, i32
  }
}

module attributes {stable_mosaic.version = 11 : i64} {
  func.func @_agg_kernel(%arg0: i32, %arg1: i32, %arg2: memref<128x128xbf16, #tpu.memory_space<vmem>>, %arg3: memref<128x128xbf16, #tpu.memory_space<vmem>>, %arg4: memref<128x128xf32, #tpu.memory_space<vmem>>) attributes {dimension_semantics = [#tpu.dimension_semantics<parallel>, #tpu.dimension_semantics<arbitrary>], iteration_bounds = array<i64: 1, 1>, scalar_prefetch = 0 : i64, scratch_operands = 0 : i64, tpu.core_type = #tpu.core_type<tc>, window_params = [{transform_indices = @transform_0, window_bounds = array<i64: 128, 128>}, {pipeline_mode = #tpu.pipeline_mode<synchronous>, transform_indices = @transform_1, window_bounds = array<i64: 128, 128>}, {transform_indices = @transform_2, window_bounds = array<i64: 128, 128>}]} {
    %c0_i32 = arith.constant 0 : i32
    %0 = arith.cmpi eq, %arg1, %c0_i32 : i32
    %1 = arith.extui %0 : i1 to i32
    %c0_i32_0 = arith.constant 0 : i32
    %2 = arith.cmpi ne, %1, %c0_i32_0 : i32
    scf.if %2 {
      %cst_7 = arith.constant 0.000000e+00 : f32
      %12 = vector.broadcast %cst_7 : f32 to vector<128x128xf32>
      %c0_8 = arith.constant 0 : index
      %c0_9 = arith.constant 0 : index
      %13 = vector.load %arg4[%c0_8, %c0_9] : memref<128x128xf32, #tpu.memory_space<vmem>>, vector<128x128xf32>
      tpu.vector_store %arg4[%c0_8, %c0_9], %12 {strides = array<i32>} : memref<128x128xf32, #tpu.memory_space<vmem>>, vector<128x128xf32>,
    } else {
    }
    %c128_i32 = arith.constant 128 : i32
    %3 = arith.muli %arg1, %c128_i32 : i32
    %4 = tpu.assume_multiple %3, 128 : i32
    %5 = arith.index_cast %4 : i32 to index
    %c0 = arith.constant 0 : index
    %6 = vector.load %arg3[%5, %c0] : memref<128x128xbf16, #tpu.memory_space<vmem>>, vector<128x128xbf16>
    %c0_1 = arith.constant 0 : index
    %c0_2 = arith.constant 0 : index
    %7 = vector.load %arg4[%c0_1, %c0_2] : memref<128x128xf32, #tpu.memory_space<vmem>>, vector<128x128xf32>
    %c0_3 = arith.constant 0 : index
    %c0_4 = arith.constant 0 : index
    %8 = vector.load %arg2[%c0_3, %c0_4] : memref<128x128xbf16, #tpu.memory_space<vmem>>, vector<128x128xbf16>
    %cst = arith.constant dense<0.000000e+00> : vector<128x128xf32>
    %9 = tpu.matmul %8, %6, %cst {dimension_numbers = #tpu.dot_dimension_numbers<[1], [0], [0], [1], [0, 0, 1, 1], [], []>} : vector<128x128xbf16>, vector<128x128xbf16>, vector<128x128xf32> -> vector<128x128xf32>
    %10 = arith.addf %7, %9 : vector<128x128xf32>
    %c0_5 = arith.constant 0 : index
    %c0_6 = arith.constant 0 : index
    %11 = vector.load %arg4[%c0_5, %c0_6] : memref<128x128xf32, #tpu.memory_space<vmem>>, vector<128x128xf32>
    tpu.vector_store %arg4[%c0_5, %c0_6], %10 {strides = array<i32>} : memref<128x128xf32, #tpu.memory_space<vmem>>, vector<128x128xf32>,
    return
  }
  func.func @transform_0(%arg0: i32, %arg1: i32) -> (i32, i32) {
    %c0_i32 = arith.constant 0 : i32
    return %arg0, %arg1 : i32, i32
  }
  func.func @transform_1(%arg0: i32, %arg1: i32) -> (i32, i32) {
    %c0_i32 = arith.constant 0 : i32
    %c0_i32_0 = arith.constant 0 : i32
    %c0_i32_1 = arith.constant 0 : i32
    return %c0_i32, %c0_i32_0 : i32, i32
  }
  func.func @transform_2(%arg0: i32, %arg1: i32) -> (i32, i32) {
    %c0_i32 = arith.constant 0 : i32
    %c0_i32_0 = arith.constant 0 : i32
    return %arg0, %c0_i32 : i32, i32
  }
}

</mosaic_0001>

<llo_original>
// kernel: graph_convolution_layer.2
$region0: #{graph_convolution_layer.2}
  #allocation0 [shape = 'u32[]', space=smem, size = 0x4, offset = 0x4, fixed_abs, tag = 'smem constant byte address 0x4 - core index']
  #allocation1 [shape = 'u32[72,128]{1,0:T(1,128)}', space=vmem, size = 0x9000, scoped, tag = 'internal scratch']
  %s0 = inlined_call_operand.vmem [shape: bf16[128,128], index: 0, kind: input, shape index: {}]
  %s1 = inlined_call_operand.vmem [shape: bf16[128,128], index: 1, kind: input, shape index: {}]
  %s2 = inlined_call_operand.vmem [shape: bf16[128,128], index: 2, kind: output, shape index: {}]
  %s3 = sld [smem:[#allocation0]]
  $region18: #{graph_convolution_layer.2} parent=0
    _
  %s5 = ssub.s32 1, %s3
  %s6 = scalar_select 0, %s5, %s3
  // Predicated region
  $region2: #{graph_convolution_layer.2} parent=0 // pred_check
    _
  $region3: #{graph_convolution_layer.2} parent=0 // pred_check_branch
    %8 = sbr.rel (0) target = $region5
  $region4: #{graph_convolution_layer.2} parent=0 // pred_region
    _
  $region5: #{graph_convolution_layer.2} parent=0 // pred_fallthru
    _
  // Predicated region
  $region6: #{graph_convolution_layer.2} parent=0 // pred_check
    _
  $region7: #{graph_convolution_layer.2} parent=0 // pred_check_branch
    %10 = sbr.rel (0) target = $region9
  $region8: #{graph_convolution_layer.2} parent=0 // pred_region
    _
  $region9: #{graph_convolution_layer.2} parent=0 // pred_fallthru
    _
  %v11 = vld [vmem:[%s0] sm:$0xf]
  %v12 = vld [vmem:[%s0 + $0x4] sm:$0xf]
  %v13 = vld [vmem:[%s0 + $0x8] sm:$0xf]
  %v14 = vld [vmem:[%s0 + $0xc] sm:$0xf]
  %v15 = vld [vmem:[%s0 + $0x10] sm:$0xf]
  %v16 = vld [vmem:[%s0 + $0x14] sm:$0xf]
  %v17 = vld [vmem:[%s0 + $0x18] sm:$0xf]
  %v18 = vld [vmem:[%s0 + $0x1c] sm:$0xf]
  %v19 = vld [vmem:[%s0 + $0x20] sm:$0xf]
  %v20 = vld [vmem:[%s0 + $0x24] sm:$0xf]
  %v21 = vld [vmem:[%s0 + $0x28] sm:$0xf]
  %v22 = vld [vmem:[%s0 + $0x2c] sm:$0xf]
  %v23 = vld [vmem:[%s0 + $0x30] sm:$0xf]
  %v24 = vld [vmem:[%s0 + $0x34] sm:$0xf]
  %v25 = vld [vmem:[%s0 + $0x38] sm:$0xf]
  %v26 = vld [vmem:[%s0 + $0x3c] sm:$0xf]
  %v27 = vld [vmem:[%s1] sm:$0xf]
  %v28 = vld [vmem:[%s1 + $0x4] sm:$0xf]
  %v29 = vld [vmem:[%s1 + $0x8] sm:$0xf]
  %v30 = vld [vmem:[%s1 + $0xc] sm:$0xf]
  %v31 = vld [vmem:[%s1 + $0x10] sm:$0xf]
  %v32 = vld [vmem:[%s1 + $0x14] sm:$0xf]
  %v33 = vld [vmem:[%s1 + $0x18] sm:$0xf]
  %v34 = vld [vmem:[%s1 + $0x1c] sm:$0xf]
  %v35 = vld [vmem:[%s1 + $0x20] sm:$0xf]
  %v36 = vld [vmem:[%s1 + $0x24] sm:$0xf]
  %v37 = vld [vmem:[%s1 + $0x28] sm:$0xf]
  %v38 = vld [vmem:[%s1 + $0x2c] sm:$0xf]
  %v39 = vld [vmem:[%s1 + $0x30] sm:$0xf]
  %v40 = vld [vmem:[%s1 + $0x34] sm:$0xf]
  %v41 = vld [vmem:[%s1 + $0x38] sm:$0xf]
  %v42 = vld [vmem:[%s1 + $0x3c] sm:$0xf]
  %v59 = vunpack.c.l.b16 %v11
  %v60 = vunpack.c.l.b16 %v12
  %v61 = vunpack.c.l.b16 %v13
  %v62 = vunpack.c.l.b16 %v14
  %v63 = vunpack.c.l.b16 %v15
  %v64 = vunpack.c.l.b16 %v16
  %v65 = vunpack.c.l.b16 %v17
  %v66 = vunpack.c.l.b16 %v18
  %v67 = vunpack.c.l.b16 %v19
  %v68 = vunpack.c.l.b16 %v20
  %v69 = vunpack.c.l.b16 %v21
  %v70 = vunpack.c.l.b16 %v22
  %v71 = vunpack.c.l.b16 %v23
  %v72 = vunpack.c.l.b16 %v24
  %v73 = vunpack.c.l.b16 %v25
  %v74 = vunpack.c.l.b16 %v26
  %v75 = vpack.c.b16 %v60, %v59
  %v76 = vpack.c.b16 %v62, %v61
  %v77 = vpack.c.b16 %v64, %v63
  %v78 = vpack.c.b16 %v66, %v65
  %v79 = vpack.c.b16 %v68, %v67
  %v80 = vpack.c.b16 %v70, %v69
  %v81 = vpack.c.b16 %v72, %v71
  %v82 = vpack.c.b16 %v74, %v73
  %v107 = vunpack.c.l.b16 %v27
  %v108 = vunpack.c.l.b16 %v28
  %v109 = vunpack.c.l.b16 %v29
  %v110 = vunpack.c.l.b16 %v30
  %v111 = vunpack.c.l.b16 %v31
  %v112 = vunpack.c.l.b16 %v32
  %v113 = vunpack.c.l.b16 %v33
  %v114 = vunpack.c.l.b16 %v34
  %v115 = vunpack.c.l.b16 %v35
  %v116 = vunpack.c.l.b16 %v36
  %v117 = vunpack.c.l.b16 %v37
  %v118 = vunpack.c.l.b16 %v38
  %v119 = vunpack.c.l.b16 %v39
  %v120 = vunpack.c.l.b16 %v40
  %v121 = vunpack.c.l.b16 %v41
  %v122 = vunpack.c.l.b16 %v42
  %v123 = vpack.c.b16 %v108, %v107
  %v124 = vpack.c.b16 %v110, %v109
  %v125 = vpack.c.b16 %v112, %v111
  %v126 = vpack.c.b16 %v114, %v113
  %v127 = vpack.c.b16 %v116, %v115
  %v128 = vpack.c.b16 %v118, %v117
  %v129 = vpack.c.b16 %v120, %v119
  %v130 = vpack.c.b16 %v122, %v121
  %139 = vmatpush.bf16.msra.mxu0 %v130
  %140 = vmatpush.bf16.msra.mxu0 %v129
  %141 = vmatpush.bf16.msra.mxu0 %v128
  %142 = vmatpush.bf16.msra.mxu0 %v127
  %143 = vmatpush.bf16.msra.mxu0 %v126
  %144 = vmatpush.bf16.msra.mxu0 %v125
  %145 = vmatpush.bf16.msra.mxu0 %v124
  %146 = vmatpush.bf16.msra.mxu0 %v123
  %147 = vmatmul.bf16.gmra.mxu0 %v75
  %v148 = vpop.f32.mrf.mxu0
  %v149 = vadd.f32 0.0, %v148
  %v150 = vpop.f32.mrf.mxu0
  %v151 = vadd.f32 0.0, %v150
  %152 = vmatmul.bf16.gmra.mxu0 %v76
  %v153 = vpop.f32.mrf.mxu0
  %v154 = vadd.f32 0.0, %v153
  %v155 = vpop.f32.mrf.mxu0
  %v156 = vadd.f32 0.0, %v155
  %157 = vmatmul.bf16.gmra.mxu0 %v77
  %v158 = vpop.f32.mrf.mxu0
  %v159 = vadd.f32 0.0, %v158
  %v160 = vpop.f32.mrf.mxu0
  %v161 = vadd.f32 0.0, %v160
  %162 = vmatmul.bf16.gmra.mxu0 %v78
  %v163 = vpop.f32.mrf.mxu0
  %v164 = vadd.f32 0.0, %v163
  %v165 = vpop.f32.mrf.mxu0
  %v166 = vadd.f32 0.0, %v165
  %167 = vmatmul.bf16.gmra.mxu0 %v79
  %v168 = vpop.f32.mrf.mxu0
  %v169 = vadd.f32 0.0, %v168
  %v170 = vpop.f32.mrf.mxu0
  %v171 = vadd.f32 0.0, %v170
  %172 = vmatmul.bf16.gmra.mxu0 %v80
  %v173 = vpop.f32.mrf.mxu0
  %v174 = vadd.f32 0.0, %v173
  %v175 = vpop.f32.mrf.mxu0
  %v176 = vadd.f32 0.0, %v175
  %177 = vmatmul.bf16.gmra.mxu0 %v81
  %v178 = vpop.f32.mrf.mxu0
  %v179 = vadd.f32 0.0, %v178
  %v180 = vpop.f32.mrf.mxu0
  %v181 = vadd.f32 0.0, %v180
  %182 = vmatmul.bf16.gmra.mxu0 %v82
  %v183 = vpop.f32.mrf.mxu0
  %v184 = vadd.f32 0.0, %v183
  %v185 = vpop.f32.mrf.mxu0
  %v186 = vadd.f32 0.0, %v185
  %187 = vdwg.mxu0
  %v188 = vpack.c.bf16 %v149, %v149
  %v189 = vpack.c.bf16 %v151, %v151
  %v190 = vpack.c.bf16 %v154, %v154
  %v191 = vpack.c.bf16 %v156, %v156
  %v192 = vpack.c.bf16 %v159, %v159
  %v193 = vpack.c.bf16 %v161, %v161
  %v194 = vpack.c.bf16 %v164, %v164
  %v195 = vpack.c.bf16 %v166, %v166
  %v196 = vpack.c.bf16 %v169, %v169
  %v197 = vpack.c.bf16 %v171, %v171
  %v198 = vpack.c.bf16 %v174, %v174
  %v199 = vpack.c.bf16 %v176, %v176
  %v200 = vpack.c.bf16 %v179, %v179
  %v201 = vpack.c.bf16 %v181, %v181
  %v202 = vpack.c.bf16 %v184, %v184
  %v203 = vpack.c.bf16 %v186, %v186
  %204 = vst [vmem:[%s2] sm:$0xf] %v188
  %205 = vst [vmem:[%s2 + $0x4] sm:$0xf] %v189
  %206 = vst [vmem:[%s2 + $0x8] sm:$0xf] %v190
  %207 = vst [vmem:[%s2 + $0xc] sm:$0xf] %v191
  %208 = vst [vmem:[%s2 + $0x10] sm:$0xf] %v192
  %209 = vst [vmem:[%s2 + $0x14] sm:$0xf] %v193
  %210 = vst [vmem:[%s2 + $0x18] sm:$0xf] %v194
  %211 = vst [vmem:[%s2 + $0x1c] sm:$0xf] %v195
  %212 = vst [vmem:[%s2 + $0x20] sm:$0xf] %v196
  %213 = vst [vmem:[%s2 + $0x24] sm:$0xf] %v197
  %214 = vst [vmem:[%s2 + $0x28] sm:$0xf] %v198
  %215 = vst [vmem:[%s2 + $0x2c] sm:$0xf] %v199
  %216 = vst [vmem:[%s2 + $0x30] sm:$0xf] %v200
  %217 = vst [vmem:[%s2 + $0x34] sm:$0xf] %v201
  %218 = vst [vmem:[%s2 + $0x38] sm:$0xf] %v202
  %219 = vst [vmem:[%s2 + $0x3c] sm:$0xf] %v203
  // Predicated region
  $region10: #{graph_convolution_layer.2} parent=0 // pred_check
    _
  $region11: #{graph_convolution_layer.2} parent=0 // pred_check_branch
    %221 = sbr.rel (0) target = $region13
  $region12: #{graph_convolution_layer.2} parent=0 // pred_region
    _
  $region13: #{graph_convolution_layer.2} parent=0 // pred_fallthru
    _
  // Predicated region
  $region14: #{graph_convolution_layer.2} parent=0 // pred_check
    _
  $region15: #{graph_convolution_layer.2} parent=0 // pred_check_branch
    %223 = sbr.rel (0) target = $region17
  $region16: #{graph_convolution_layer.2} parent=0 // pred_region
    _
  $region17: #{graph_convolution_layer.2} parent=0 // pred_fallthru
    _

// kernel: graph_convolution_layer.3
$region0: #{graph_convolution_layer.3}
  #allocation0 [shape = 'u32[]', space=smem, size = 0x4, offset = 0x4, fixed_abs, tag = 'smem constant byte address 0x4 - core index']
  #allocation1 [shape = 'u32[72,128]{1,0:T(1,128)}', space=vmem, size = 0x9000, scoped, tag = 'internal scratch']
  %s0 = inlined_call_operand.vmem [shape: bf16[128,128], index: 0, kind: input, shape index: {}]
  %s1 = inlined_call_operand.vmem [shape: bf16[128,128], index: 1, kind: input, shape index: {}]
  %s2 = inlined_call_operand.vmem [shape: f32[128,128], index: 2, kind: output, shape index: {}]
  %s3 = sld [smem:[#allocation0]]
  $region22: #{graph_convolution_layer.3} parent=0
    _
  %s5 = ssub.s32 1, %s3
  %s6 = scalar_select 0, %s5, %s3
  // Predicated region
  $region2: #{graph_convolution_layer.3} parent=0 // pred_check
    _
  $region3: #{graph_convolution_layer.3} parent=0 // pred_check_branch
    %8 = sbr.rel (0) target = $region5
  $region4: #{graph_convolution_layer.3} parent=0 // pred_region
    _
  $region5: #{graph_convolution_layer.3} parent=0 // pred_fallthru
    _
  // Predicated region
  $region6: #{graph_convolution_layer.3} parent=0 // pred_check
    _
  $region7: #{graph_convolution_layer.3} parent=0 // pred_check_branch
    %10 = sbr.rel (0) target = $region9
  $region8: #{graph_convolution_layer.3} parent=0 // pred_region
    _
  $region9: #{graph_convolution_layer.3} parent=0 // pred_fallthru
    _
  %p11 = scmp.eq.s32.totalorder 0, 0
  // Predicated region
  $region10: #{graph_convolution_layer.3} parent=0 // pred_check
    %p12 = pneg %p11
  $region11: #{graph_convolution_layer.3} parent=0 // pred_check_branch
    %14 = sbr.rel (%p12) target = $region13
  $region12: #{graph_convolution_layer.3} parent=0 // pred_region
    %15 = vst [vmem:[%s2] sm:$0xff] 0.0
    %16 = vst [vmem:[%s2 + $0x8] sm:$0xff] 0.0
    %17 = vst [vmem:[%s2 + $0x10] sm:$0xff] 0.0
    %18 = vst [vmem:[%s2 + $0x18] sm:$0xff] 0.0
    %19 = vst [vmem:[%s2 + $0x20] sm:$0xff] 0.0
    %20 = vst [vmem:[%s2 + $0x28] sm:$0xff] 0.0
    %21 = vst [vmem:[%s2 + $0x30] sm:$0xff] 0.0
    %22 = vst [vmem:[%s2 + $0x38] sm:$0xff] 0.0
    %23 = vst [vmem:[%s2 + $0x40] sm:$0xff] 0.0
    %24 = vst [vmem:[%s2 + $0x48] sm:$0xff] 0.0
    %25 = vst [vmem:[%s2 + $0x50] sm:$0xff] 0.0
    %26 = vst [vmem:[%s2 + $0x58] sm:$0xff] 0.0
    %27 = vst [vmem:[%s2 + $0x60] sm:$0xff] 0.0
    %28 = vst [vmem:[%s2 + $0x68] sm:$0xff] 0.0
    %29 = vst [vmem:[%s2 + $0x70] sm:$0xff] 0.0
    %30 = vst [vmem:[%s2 + $0x78] sm:$0xff] 0.0
  $region13: #{graph_convolution_layer.3} parent=0 // pred_fallthru
    _
  %s31 = smul.u32 0, 128
  %s32 = sshra.s32 %s31, 3
  %s33 = sand.u32 %s31, 7
  %s34 = smul.addr %s32, 4
  %s35 = scalar_lea.vmem %s1, %s34
  %v36 = vld [vmem:[%s35] sm:$0xf]
  %v37 = vld [vmem:[%s35 + $0x4] sm:$0xf]
  %v38 = vld [vmem:[%s35 + $0x8] sm:$0xf]
  %v39 = vld [vmem:[%s35 + $0xc] sm:$0xf]
  %v40 = vld [vmem:[%s35 + $0x10] sm:$0xf]
  %v41 = vld [vmem:[%s35 + $0x14] sm:$0xf]
  %v42 = vld [vmem:[%s35 + $0x18] sm:$0xf]
  %v43 = vld [vmem:[%s35 + $0x1c] sm:$0xf]
  %v44 = vld [vmem:[%s35 + $0x20] sm:$0xf]
  %v45 = vld [vmem:[%s35 + $0x24] sm:$0xf]
  %v46 = vld [vmem:[%s35 + $0x28] sm:$0xf]
  %v47 = vld [vmem:[%s35 + $0x2c] sm:$0xf]
  %v48 = vld [vmem:[%s35 + $0x30] sm:$0xf]
  %v49 = vld [vmem:[%s35 + $0x34] sm:$0xf]
  %v50 = vld [vmem:[%s35 + $0x38] sm:$0xf]
  %v51 = vld [vmem:[%s35 + $0x3c] sm:$0xf]
  %v52 = vld [vmem:[%s2] sm:$0xff]
  %v53 = vld [vmem:[%s2 + $0x8] sm:$0xff]
  %v54 = vld [vmem:[%s2 + $0x10] sm:$0xff]
  %v55 = vld [vmem:[%s2 + $0x18] sm:$0xff]
  %v56 = vld [vmem:[%s2 + $0x20] sm:$0xff]
  %v57 = vld [vmem:[%s2 + $0x28] sm:$0xff]
  %v58 = vld [vmem:[%s2 + $0x30] sm:$0xff]
  %v59 = vld [vmem:[%s2 + $0x38] sm:$0xff]
  %v60 = vld [vmem:[%s2 + $0x40] sm:$0xff]
  %v61 = vld [vmem:[%s2 + $0x48] sm:$0xff]
  %v62 = vld [vmem:[%s2 + $0x50] sm:$0xff]
  %v63 = vld [vmem:[%s2 + $0x58] sm:$0xff]
  %v64 = vld [vmem:[%s2 + $0x60] sm:$0xff]
  %v65 = vld [vmem:[%s2 + $0x68] sm:$0xff]
  %v66 = vld [vmem:[%s2 + $0x70] sm:$0xff]
  %v67 = vld [vmem:[%s2 + $0x78] sm:$0xff]
  %v68 = vld [vmem:[%s0] sm:$0xf]
  %v69 = vld [vmem:[%s0 + $0x4] sm:$0xf]
  %v70 = vld [vmem:[%s0 + $0x8] sm:$0xf]
  %v71 = vld [vmem:[%s0 + $0xc] sm:$0xf]
  %v72 = vld [vmem:[%s0 + $0x10] sm:$0xf]
  %v73 = vld [vmem:[%s0 + $0x14] sm:$0xf]
  %v74 = vld [vmem:[%s0 + $0x18] sm:$0xf]
  %v75 = vld [vmem:[%s0 + $0x1c] sm:$0xf]
  %v76 = vld [vmem:[%s0 + $0x20] sm:$0xf]
  %v77 = vld [vmem:[%s0 + $0x24] sm:$0xf]
  %v78 = vld [vmem:[%s0 + $0x28] sm:$0xf]
  %v79 = vld [vmem:[%s0 + $0x2c] sm:$0xf]
  %v80 = vld [vmem:[%s0 + $0x30] sm:$0xf]
  %v81 = vld [vmem:[%s0 + $0x34] sm:$0xf]
  %v82 = vld [vmem:[%s0 + $0x38] sm:$0xf]
  %v83 = vld [vmem:[%s0 + $0x3c] sm:$0xf]
  %v100 = vunpack.c.l.b16 %v68
  %v101 = vunpack.c.l.b16 %v69
  %v102 = vunpack.c.l.b16 %v70
  %v103 = vunpack.c.l.b16 %v71
  %v104 = vunpack.c.l.b16 %v72
  %v105 = vunpack.c.l.b16 %v73
  %v106 = vunpack.c.l.b16 %v74
  %v107 = vunpack.c.l.b16 %v75
  %v108 = vunpack.c.l.b16 %v76
  %v109 = vunpack.c.l.b16 %v77
  %v110 = vunpack.c.l.b16 %v78
  %v111 = vunpack.c.l.b16 %v79
  %v112 = vunpack.c.l.b16 %v80
  %v113 = vunpack.c.l.b16 %v81
  %v114 = vunpack.c.l.b16 %v82
  %v115 = vunpack.c.l.b16 %v83
  %v116 = vpack.c.b16 %v101, %v100
  %v117 = vpack.c.b16 %v103, %v102
  %v118 = vpack.c.b16 %v105, %v104
  %v119 = vpack.c.b16 %v107, %v106
  %v120 = vpack.c.b16 %v109, %v108
  %v121 = vpack.c.b16 %v111, %v110
  %v122 = vpack.c.b16 %v113, %v112
  %v123 = vpack.c.b16 %v115, %v114
  %v148 = vunpack.c.l.b16 %v36
  %v149 = vunpack.c.l.b16 %v37
  %v150 = vunpack.c.l.b16 %v38
  %v151 = vunpack.c.l.b16 %v39
  %v152 = vunpack.c.l.b16 %v40
  %v153 = vunpack.c.l.b16 %v41
  %v154 = vunpack.c.l.b16 %v42
  %v155 = vunpack.c.l.b16 %v43
  %v156 = vunpack.c.l.b16 %v44
  %v157 = vunpack.c.l.b16 %v45
  %v158 = vunpack.c.l.b16 %v46
  %v159 = vunpack.c.l.b16 %v47
  %v160 = vunpack.c.l.b16 %v48
  %v161 = vunpack.c.l.b16 %v49
  %v162 = vunpack.c.l.b16 %v50
  %v163 = vunpack.c.l.b16 %v51
  %v164 = vpack.c.b16 %v149, %v148
  %v165 = vpack.c.b16 %v151, %v150
  %v166 = vpack.c.b16 %v153, %v152
  %v167 = vpack.c.b16 %v155, %v154
  %v168 = vpack.c.b16 %v157, %v156
  %v169 = vpack.c.b16 %v159, %v158
  %v170 = vpack.c.b16 %v161, %v160
  %v171 = vpack.c.b16 %v163, %v162
  %180 = vmatpush.bf16.msra.mxu0 %v171
  %181 = vmatpush.bf16.msra.mxu0 %v170
  %182 = vmatpush.bf16.msra.mxu0 %v169
  %183 = vmatpush.bf16.msra.mxu0 %v168
  %184 = vmatpush.bf16.msra.mxu0 %v167
  %185 = vmatpush.bf16.msra.mxu0 %v166
  %186 = vmatpush.bf16.msra.mxu0 %v165
  %187 = vmatpush.bf16.msra.mxu0 %v164
  %188 = vmatmul.bf16.gmra.mxu0 %v116
  %v189 = vpop.f32.mrf.mxu0
  %v190 = vadd.f32 0.0, %v189
  %v191 = vpop.f32.mrf.mxu0
  %v192 = vadd.f32 0.0, %v191
  %193 = vmatmul.bf16.gmra.mxu0 %v117
  %v194 = vpop.f32.mrf.mxu0
  %v195 = vadd.f32 0.0, %v194
  %v196 = vpop.f32.mrf.mxu0
  %v197 = vadd.f32 0.0, %v196
  %198 = vmatmul.bf16.gmra.mxu0 %v118
  %v199 = vpop.f32.mrf.mxu0
  %v200 = vadd.f32 0.0, %v199
  %v201 = vpop.f32.mrf.mxu0
  %v202 = vadd.f32 0.0, %v201
  %203 = vmatmul.bf16.gmra.mxu0 %v119
  %v204 = vpop.f32.mrf.mxu0
  %v205 = vadd.f32 0.0, %v204
  %v206 = vpop.f32.mrf.mxu0
  %v207 = vadd.f32 0.0, %v206
  %208 = vmatmul.bf16.gmra.mxu0 %v120
  %v209 = vpop.f32.mrf.mxu0
  %v210 = vadd.f32 0.0, %v209
  %v211 = vpop.f32.mrf.mxu0
  %v212 = vadd.f32 0.0, %v211
  %213 = vmatmul.bf16.gmra.mxu0 %v121
  %v214 = vpop.f32.mrf.mxu0
  %v215 = vadd.f32 0.0, %v214
  %v216 = vpop.f32.mrf.mxu0
  %v217 = vadd.f32 0.0, %v216
  %218 = vmatmul.bf16.gmra.mxu0 %v122
  %v219 = vpop.f32.mrf.mxu0
  %v220 = vadd.f32 0.0, %v219
  %v221 = vpop.f32.mrf.mxu0
  %v222 = vadd.f32 0.0, %v221
  %223 = vmatmul.bf16.gmra.mxu0 %v123
  %v224 = vpop.f32.mrf.mxu0
  %v225 = vadd.f32 0.0, %v224
  %v226 = vpop.f32.mrf.mxu0
  %v227 = vadd.f32 0.0, %v226
  %228 = vdwg.mxu0
  %v229 = vadd.f32 %v52, %v190
  %v230 = vadd.f32 %v53, %v192
  %v231 = vadd.f32 %v54, %v195
  %v232 = vadd.f32 %v55, %v197
  %v233 = vadd.f32 %v56, %v200
  %v234 = vadd.f32 %v57, %v202
  %v235 = vadd.f32 %v58, %v205
  %v236 = vadd.f32 %v59, %v207
  %v237 = vadd.f32 %v60, %v210
  %v238 = vadd.f32 %v61, %v212
  %v239 = vadd.f32 %v62, %v215
  %v240 = vadd.f32 %v63, %v217
  %v241 = vadd.f32 %v64, %v220
  %v242 = vadd.f32 %v65, %v222
  %v243 = vadd.f32 %v66, %v225
  %v244 = vadd.f32 %v67, %v227
  %245 = vst [vmem:[%s2] sm:$0xff] %v229
  %246 = vst [vmem:[%s2 + $0x8] sm:$0xff] %v230
  %247 = vst [vmem:[%s2 + $0x10] sm:$0xff] %v231
  %248 = vst [vmem:[%s2 + $0x18] sm:$0xff] %v232
  %249 = vst [vmem:[%s2 + $0x20] sm:$0xff] %v233
  %250 = vst [vmem:[%s2 + $0x28] sm:$0xff] %v234
  %251 = vst [vmem:[%s2 + $0x30] sm:$0xff] %v235
  %252 = vst [vmem:[%s2 + $0x38] sm:$0xff] %v236
  %253 = vst [vmem:[%s2 + $0x40] sm:$0xff] %v237
  %254 = vst [vmem:[%s2 + $0x48] sm:$0xff] %v238
  %255 = vst [vmem:[%s2 + $0x50] sm:$0xff] %v239
  %256 = vst [vmem:[%s2 + $0x58] sm:$0xff] %v240
  %257 = vst [vmem:[%s2 + $0x60] sm:$0xff] %v241
  %258 = vst [vmem:[%s2 + $0x68] sm:$0xff] %v242
  %259 = vst [vmem:[%s2 + $0x70] sm:$0xff] %v243
  %260 = vst [vmem:[%s2 + $0x78] sm:$0xff] %v244
  // Predicated region
  $region14: #{graph_convolution_layer.3} parent=0 // pred_check
    _
  $region15: #{graph_convolution_layer.3} parent=0 // pred_check_branch
    %262 = sbr.rel (0) target = $region17
  $region16: #{graph_convolution_layer.3} parent=0 // pred_region
    _
  $region17: #{graph_convolution_layer.3} parent=0 // pred_fallthru
    _
  // Predicated region
  $region18: #{graph_convolution_layer.3} parent=0 // pred_check
    _
  $region19: #{graph_convolution_layer.3} parent=0 // pred_check_branch
    %264 = sbr.rel (0) target = $region21
  $region20: #{graph_convolution_layer.3} parent=0 // pred_region
    _
  $region21: #{graph_convolution_layer.3} parent=0 // pred_fallthru
    _

</llo_original>
